<compile_context>
chip_gen: v5e
topology: v5e:2x2
jax: 0.10.0
libtpu: 0.0.40
codegen_flags: <defaults>
</compile_context>

<pallas_src>
import math

import jax
import jax.numpy as jnp
from jax import lax
from jax.experimental import pallas as pl
from jax.experimental.pallas import tpu as pltpu


def _xsrelu_kernel(x_ref, side_ref, o_ref):
    # x_ref:    (TR, TN)  activation tile, native dtype
    # side_ref: (TR, 4)   per-row [x_low, x_high, 1-p, p] in f32
    # o_ref:    (TR, TN)  output tile, native dtype
    x = x_ref[...].astype(jnp.float32)
    s = side_ref[...]
    lo = s[:, 0:1]
    hi = s[:, 1:2]
    omp = s[:, 2:3]   # 1 - p
    p = s[:, 3:4]
    r_low = jnp.maximum(x - lo, 0.0)
    r_high = jnp.maximum(x - hi, 0.0)
    o_ref[...] = (r_low * omp + r_high * p).astype(o_ref.dtype)


def _round_up(v, m):
    return ((v + m - 1) // m) * m


def _pick_tiles(rows, n_pad, itemsize):
    # Target ~8 MiB of HBM traffic per grid step while staying v7x-VMEM-safe:
    # (in_tile + out_tile) x 2 pipeline buffers <= ~32 MiB resident.
    tr_cap = 512
    tn_cap = 8192 if itemsize <= 2 else 4096
    tr = rows if rows <= tr_cap else tr_cap
    tn = n_pad if n_pad <= tn_cap else tn_cap
    # Megacore guard (v7x has 2 TensorCores sharded over 'parallel' axes):
    # if everything fits one tile but is large, split an axis so grid >= 2.
    if tr == rows and tn == n_pad and rows * n_pad * itemsize > (2 << 20):
        if rows >= 16:
            tr = _round_up(-(-rows // 2), 8)       # multiple of 8 -> legal block
        elif n_pad >= 256:
            tn = _round_up(-(-n_pad // 2), 128)    # multiple of 128 -> legal block
    return tr, tn


def xsrelu_cw_perc_param_4(x, plogit, spread=0.01):
    # ---- shape handling (mirrors the PyTorch view) --------------------------
    if x.ndim > 2:
        B, C = x.shape[0], x.shape[1]
        N = math.prod(x.shape[2:])
    else:
        B, C = x.shape[0], 1
        N = x.shape[1]
    rows = B * C

    xr = x.reshape(B, C, N)  # native dtype — no wrapper-side f32 upcast

    # ---- glue: per-(batch, channel) order-statistic thresholds --------------
    # TODO(synk): torch.sort has no Pallas/Mosaic lowering; an exact O(N)
    # radix-select of the two consumed quantiles would remove the dominant
    # cost here.  Interim: unstable lax.sort (cheaper than stable jnp.sort).
    srt = lax.sort(xr, dimension=-1, is_stable=False)
    p = jax.nn.sigmoid(jnp.broadcast_to(plogit, (C,)).astype(jnp.float32) * 5.0)  # (C,)
    # torch .long() truncates toward zero; negative indices wrap to the end.
    idx_low = (N * (p - spread)).astype(jnp.int32)
    idx_high = (N * (p + spread)).astype(jnp.int32)
    idx_low = jnp.clip(jnp.where(idx_low < 0, idx_low + N, idx_low), 0, N - 1)
    idx_high = jnp.clip(jnp.where(idx_high < 0, idx_high + N, idx_high), 0, N - 1)
    ch = jnp.arange(C)
    x_low = srt[:, ch, idx_low].astype(jnp.float32)    # (B, C)
    x_high = srt[:, ch, idx_high].astype(jnp.float32)  # (B, C)

    # Pack per-row scalars into one small side array: [lo, hi, 1-p, p].
    side = jnp.stack(
        [
            x_low,
            x_high,
            jnp.broadcast_to((1.0 - p)[None, :], (B, C)),
            jnp.broadcast_to(p[None, :], (B, C)),
        ],
        axis=-1,
    ).reshape(rows, 4).astype(jnp.float32)

    # ---- lane-dense packing for the Pallas elementwise pass ------------------
    n_pad = _round_up(N, 128)
    xf = xr.reshape(rows, N)
    if n_pad != N:
        xf = jnp.pad(xf, ((0, 0), (0, n_pad - N)))  # padded cols sliced off below

    tr, tn = _pick_tiles(rows, n_pad, jnp.dtype(x.dtype).itemsize)
    grid = (pl.cdiv(rows, tr), pl.cdiv(n_pad, tn))

    out = pl.pallas_call(
        _xsrelu_kernel,
        out_shape=jax.ShapeDtypeStruct((rows, n_pad), x.dtype),
        grid_spec=pltpu.PrefetchScalarGridSpec(
            num_scalar_prefetch=0,
            grid=grid,
            in_specs=[
                pl.BlockSpec((tr, tn), lambda i, j: (i, j)),
                # side array: block index ignores the lane-tile axis, so it is
                # not re-fetched for every N tile.
                pl.BlockSpec((tr, 4), lambda i, j: (i, 0)),
            ],
            out_specs=pl.BlockSpec((tr, tn), lambda i, j: (i, j)),
        ),
        compiler_params=pltpu.CompilerParams(
            dimension_semantics=("parallel", "parallel"),
            vmem_limit_bytes=48 * 1024 * 1024,
        ),
        # Donate the activation buffer to the output (same shape/dtype).
        input_output_aliases={0: 0},
    )(xf, side)

    if n_pad != N:
        out = out[:, :N]
    return out.reshape(x.shape)


def _reference(x, plogit, spread=0.01):
    # pure-JAX reference mirroring the PyTorch forward, for a sanity check
    if x.ndim > 2:
        B, C = x.shape[0], x.shape[1]
        N = math.prod(x.shape[2:])
    else:
        B, C = x.shape[0], 1
        N = x.shape[1]
    xr = x.reshape(B, C, N).astype(jnp.float32)
    srt = jnp.sort(xr, axis=-1)
    p = jax.nn.sigmoid(jnp.broadcast_to(plogit, (C,)).astype(jnp.float32) * 5.0)
    p_low = (N * (p - spread)).astype(jnp.int32)
    p_high = (N * (p + spread)).astype(jnp.int32)
    p_low = jnp.clip(jnp.where(p_low < 0, p_low + N, p_low), 0, N - 1)
    p_high = jnp.clip(jnp.where(p_high < 0, p_high + N, p_high), 0, N - 1)
    ch = jnp.arange(C)
    x_low = srt[:, ch, p_low][..., None]
    x_high = srt[:, ch, p_high][..., None]
    r_low = jnp.maximum(xr - x_low, 0.0)
    r_high = jnp.maximum(xr - x_high, 0.0)
    res = r_low + (r_high - r_low) * p.reshape(-1, 1)
    return res.reshape(x.shape)


if __name__ == "__main__":
    key = jax.random.PRNGKey(0)
    B, C, H, W = 2, 4, 16, 16
    x = jax.random.normal(key, (B, C, H, W), dtype=jnp.float32)

    # Parameter init from module __init__: plogit=1.5 -> tensor([0.3]),
    # repeated to C channels on first forward.
    plogit = jnp.full((C,), 1.5 / 5.0, dtype=jnp.float32)

    out = xsrelu_cw_perc_param_4(x, plogit)
    jax.block_until_ready(out)

    ref = _reference(x, plogit)
    assert out.shape == x.shape
    assert out.dtype == x.dtype
    assert jnp.allclose(out.astype(jnp.float32), ref, atol=1e-5, rtol=1e-5)
    print("KERNEL_OK")
</pallas_src>

<mosaic_0001>
module attributes {stable_mosaic.version = 11 : i64} {
  func.func @_xsrelu_kernel(%arg0: i32, %arg1: i32, %arg2: memref<8x256xf32, #tpu.memory_space<vmem>>, %arg3: memref<8x4xf32, #tpu.memory_space<vmem>>, %arg4: memref<8x256xf32, #tpu.memory_space<vmem>>) attributes {dimension_semantics = [#tpu.dimension_semantics<parallel>, #tpu.dimension_semantics<parallel>], iteration_bounds = array<i64: 1, 1>, scalar_prefetch = 0 : i64, scratch_operands = 0 : i64, tpu.core_type = #tpu.core_type<tc>, window_params = [{transform_indices = @transform_0, window_bounds = array<i64: 8, 256>}, {transform_indices = @transform_1, window_bounds = array<i64: 8, 4>}, {transform_indices = @transform_2, window_bounds = array<i64: 8, 256>}]} {
    %c0 = arith.constant 0 : index
    %c0_0 = arith.constant 0 : index
    %0 = vector.load %arg2[%c0, %c0_0] : memref<8x256xf32, #tpu.memory_space<vmem>>, vector<8x256xf32>
    %c0_1 = arith.constant 0 : index
    %c0_2 = arith.constant 0 : index
    %1 = vector.load %arg3[%c0_1, %c0_2] : memref<8x4xf32, #tpu.memory_space<vmem>>, vector<8x4xf32>
    %2 = vector.extract_strided_slice %1 {offsets = [0, 0], sizes = [8, 1], strides = [1, 1]} : vector<8x4xf32> to vector<8x1xf32>
    %3 = vector.extract_strided_slice %1 {offsets = [0, 1], sizes = [8, 1], strides = [1, 1]} : vector<8x4xf32> to vector<8x1xf32>
    %4 = vector.extract_strided_slice %1 {offsets = [0, 2], sizes = [8, 1], strides = [1, 1]} : vector<8x4xf32> to vector<8x1xf32>
    %5 = vector.extract_strided_slice %1 {offsets = [0, 3], sizes = [8, 1], strides = [1, 1]} : vector<8x4xf32> to vector<8x1xf32>
    %6 = vector.broadcast %2 : vector<8x1xf32> to vector<8x256xf32>
    %7 = arith.subf %0, %6 : vector<8x256xf32>
    %cst = arith.constant 0.000000e+00 : f32
    %8 = vector.broadcast %cst : f32 to vector<8x256xf32>
    %9 = arith.maximumf %7, %8 : vector<8x256xf32>
    %10 = vector.broadcast %3 : vector<8x1xf32> to vector<8x256xf32>
    %11 = arith.subf %0, %10 : vector<8x256xf32>
    %cst_3 = arith.constant 0.000000e+00 : f32
    %12 = vector.broadcast %cst_3 : f32 to vector<8x256xf32>
    %13 = arith.maximumf %11, %12 : vector<8x256xf32>
    %14 = vector.broadcast %4 : vector<8x1xf32> to vector<8x256xf32>
    %15 = arith.mulf %9, %14 : vector<8x256xf32>
    %16 = vector.broadcast %5 : vector<8x1xf32> to vector<8x256xf32>
    %17 = arith.mulf %13, %16 : vector<8x256xf32>
    %18 = arith.addf %15, %17 : vector<8x256xf32>
    %c0_4 = arith.constant 0 : index
    %c0_5 = arith.constant 0 : index
    %19 = vector.load %arg4[%c0_4, %c0_5] : memref<8x256xf32, #tpu.memory_space<vmem>>, vector<8x256xf32>
    tpu.vector_store %arg4[%c0_4, %c0_5], %18 {strides = array<i32>} : memref<8x256xf32, #tpu.memory_space<vmem>>, vector<8x256xf32>,
    return
  }
  func.func @transform_0(%arg0: i32, %arg1: i32) -> (i32, i32) {
    %c0_i32 = arith.constant 0 : i32
    return %arg0, %arg1 : i32, i32
  }
  func.func @transform_1(%arg0: i32, %arg1: i32) -> (i32, i32) {
    %c0_i32 = arith.constant 0 : i32
    %c0_i32_0 = arith.constant 0 : i32
    return %arg0, %c0_i32 : i32, i32
  }
  func.func @transform_2(%arg0: i32, %arg1: i32) -> (i32, i32) {
    %c0_i32 = arith.constant 0 : i32
    return %arg0, %arg1 : i32, i32
  }
}

</mosaic_0001>

<llo_original>
// kernel: tpu_custom_call.1
$region0: #{tpu_custom_call.1}
  #allocation0 [shape = 'u32[]', space=smem, size = 0x4, offset = 0x4, fixed_abs, tag = 'smem constant byte address 0x4 - core index']
  #allocation1 [shape = 'u32[72,128]{1,0:T(1,128)}', space=vmem, size = 0x9000, scoped, tag = 'internal scratch']
  %s0 = inlined_call_operand.hbm [shape: f32[8,256], index: 0, kind: input, shape index: {}, may-alias: {0,2}]
  %s1 = inlined_call_operand.vmem [shape: f32[8,4], index: 1, kind: input, shape index: {}]
  %s2 = inlined_call_operand.hbm [shape: f32[8,256], index: 2, kind: output, shape index: {}, may-alias: {0,2}]
  %s3 = sld [smem:[#allocation0]]
  $region22: #{tpu_custom_call.1} parent=0
    _
  %s5 = ssub.s32 1, %s3
  %s6 = scalar_select 0, %s5, %s3
  $region1: #{tpu_custom_call.1} parent=0
    #allocation2 [shape = 'u8[8192]{0}', space=vmem, size = 0x2000, scoped, tag = 'input window, operand 0, single buffered']
    #allocation3 [shape = 's32[1]{0}', space=sflag, size = 0x4, scoped, tag = 'scoped memory for tpu_custom_call.1']
    #allocation4 [shape = 's32[1]{0}', space=sflag, size = 0x4, scoped, tag = 'scoped memory for tpu_custom_call.1']
    #allocation5 [shape = 'u8[8192]{0}', space=vmem, size = 0x2000, scoped, tag = 'output window, operand 0, single buffered']
    %7 = vsyncpa [#allocation3], 0
    %8 = vsyncpa [#allocation4], 0
    // Predicated region
    $region2: #{tpu_custom_call.1} parent=1 // pred_check
      _
    $region3: #{tpu_custom_call.1} parent=1 // pred_check_branch
      %10 = sbr.rel (0) target = $region5
    $region4: #{tpu_custom_call.1} parent=1 // pred_region
      %12 = vsyncadd [#allocation3], 0
      %s14 = sshll.u32 %s0, 4
      %s15 = int_to_ptr.hbm [resolvable:$true] %s14
      %s16 = sshll.u32 [#allocation2], 4
      %s17 = int_to_ptr.vmem [resolvable:$true] %s16
      %19 = dma.hbm_to_vmem [thread:$0]  %s15, 256, %s17, [#allocation3]
    $region5: #{tpu_custom_call.1} parent=1 // pred_fallthru
      _
    // Predicated region
    $region6: #{tpu_custom_call.1} parent=1 // pred_check
      _
    $region7: #{tpu_custom_call.1} parent=1 // pred_check_branch
      %21 = sbr.rel (0) target = $region9
    $region8: #{tpu_custom_call.1} parent=1 // pred_region
      _
    $region9: #{tpu_custom_call.1} parent=1 // pred_fallthru
      _
    // Predicated region
    $region10: #{tpu_custom_call.1} parent=1 // pred_check
      _
    $region11: #{tpu_custom_call.1} parent=1 // pred_check_branch
      %23 = sbr.rel (0) target = $region13
    $region12: #{tpu_custom_call.1} parent=1 // pred_region
      %25 = dma.done [#allocation3], 256
    $region13: #{tpu_custom_call.1} parent=1 // pred_fallthru
      _
    %v26 = vld [vmem:[#allocation2] sm:$0xff]
    %v27 = vld [vmem:[#allocation2 + $0x8] sm:$0xff]
    %v28 = vld [vmem:[%s1] sm:$0xff]
    %30 = vset.pattern.permute.xlu0 0
    %31 = vperm.xlu0 %30, %v28
    %v32 = vpop.permute.xlu0 %31
    %v34 = vsub.f32 %v26, %v32
    %v35 = vsub.f32 %v27, %v32
    %v36 = vmax.f32 %v34, 0.0
    %v37 = vmax.f32 %v35, 0.0
    %38 = vset.pattern.permute.xlu0 1
    %39 = vperm.xlu0 %38, %v28
    %v40 = vpop.permute.xlu0 %39
    %v42 = vsub.f32 %v26, %v40
    %v43 = vsub.f32 %v27, %v40
    %v44 = vmax.f32 %v42, 0.0
    %v45 = vmax.f32 %v43, 0.0
    %46 = vset.pattern.permute.xlu0 2
    %47 = vperm.xlu0 %46, %v28
    %v48 = vpop.permute.xlu0 %47
    %v50 = vmul.f32 %v36, %v48
    %v51 = vmul.f32 %v37, %v48
    %52 = vset.pattern.permute.xlu0 3
    %53 = vperm.xlu0 %52, %v28
    %v54 = vpop.permute.xlu0 %53
    %v56 = vmul.f32 %v44, %v54
    %v57 = vmul.f32 %v45, %v54
    %v58 = vadd.f32 %v50, %v56
    %v59 = vadd.f32 %v51, %v57
    %60 = vst [vmem:[#allocation5] sm:$0xff] %v58
    %61 = vst [vmem:[#allocation5 + $0x8] sm:$0xff] %v59
    // Predicated region
    $region14: #{tpu_custom_call.1} parent=1 // pred_check
      _
    $region15: #{tpu_custom_call.1} parent=1 // pred_check_branch
      %63 = sbr.rel (0) target = $region17
    $region16: #{tpu_custom_call.1} parent=1 // pred_region
      %65 = vsyncadd [#allocation4], 0
      %s67 = sshll.u32 [#allocation5], 4
      %s68 = int_to_ptr.vmem [resolvable:$true] %s67
      %s69 = sshll.u32 %s2, 4
      %s70 = int_to_ptr.hbm [resolvable:$true] %s69
      %72 = dma.vmem_to_hbm [thread:$0]  %s68, 256, %s70, [#allocation4]
    $region17: #{tpu_custom_call.1} parent=1 // pred_fallthru
      _
    // Predicated region
    $region18: #{tpu_custom_call.1} parent=1 // pred_check
      _
    $region19: #{tpu_custom_call.1} parent=1 // pred_check_branch
      %74 = sbr.rel (0) target = $region21
    $region20: #{tpu_custom_call.1} parent=1 // pred_region
      %76 = dma.done [#allocation4], 256
    $region21: #{tpu_custom_call.1} parent=1 // pred_fallthru
      _
    %77 = vsyncpa [#allocation3], 1
    %78 = vsyncpa [#allocation4], 1

</llo_original>
